<compile_context>
chip_gen: v7x
topology: tpu7x:2x2x1
jax: 0.10.0
libtpu: 0.0.40
codegen_flags: <defaults>
</compile_context>

<pallas_src>
import jax
import jax.numpy as jnp
from jax import lax
from jax.experimental import pallas as pl
from jax.experimental.pallas import tpu as pltpu

VEC_SIZE = 512
INIT_SCALE = 0.001
_COS_EPS = 1e-8  # torch.cosine_similarity default eps


def _round_up(x, m):
    return ((x + m - 1) // m) * m


def _sim_kernel(inp_ref, pred_hat_ref, false_ref, diff_ref, out_ref):
    inp = inp_ref[...]          # (TB, V) f32
    p_hat = pred_hat_ref[...]   # (1, V)  f32, already unit-norm (eps-clamped)
    fal = false_ref[...]        # (1, V)  f32
    diff = diff_ref[...]        # (1, V)  f32  = true - false

    # cosine similarity along the feature axis (torch dim=1 semantics):
    #   dot(x, p) / (max(||x||, eps) * max(||p||, eps))
    # predicate norm is folded into p_hat by the wrapper; for the input norm use
    # rsqrt on the EUP:  1/max(sqrt(ss), eps) == rsqrt(max(ss, eps^2)).
    dot = jnp.sum(inp * p_hat, axis=-1, keepdims=True)          # (TB, 1)
    sum_sq = jnp.sum(inp * inp, axis=-1, keepdims=True)         # (TB, 1)
    inv_norm = lax.rsqrt(jnp.maximum(sum_sq, _COS_EPS * _COS_EPS))
    matched = dot * inv_norm                                    # (TB, 1)

    # ELU (alpha = 1.0); matched is in [-1, 1] so exp() is safe.
    matched = jnp.where(matched > 0, matched, jnp.exp(matched) - 1.0)

    # out[b, v] = true[v] * m[b] + false[v] * (1 - m[b]) = false + m * (true - false)
    out_ref[...] = fal + matched * diff


def sim_forward(inp, predicate, true_vec, false_vec, *, block_b=1024):
    """inp: (B, V) f32; params: (V,) f32. Returns (B, V) f32."""
    B, V = inp.shape

    # Hoist the predicate normalization out of the kernel (constant per call).
    pred_norm = jnp.maximum(jnp.sqrt(jnp.sum(predicate * predicate)), _COS_EPS)
    pred_hat = (predicate / pred_norm).reshape(1, V).astype(jnp.float32)
    false2 = false_vec.reshape(1, V).astype(jnp.float32)
    diff2 = (true_vec - false_vec).reshape(1, V).astype(jnp.float32)

    # Batch tile: multiple of 8 sublanes, capped at block_b (fits comfortably in
    # the default scoped VMEM on v5e/v6e/v7x: 1024*512*4B = 2 MiB per buffer,
    # ~8 MiB live with double-buffered input + output).
    tb = min(block_b, _round_up(B, 8))
    padded_b = _round_up(B, tb)
    if padded_b != B:
        # Zero rows are safe: dot = 0, sum_sq = 0 -> matched = 0 -> out = false.
        inp = jnp.pad(inp, ((0, padded_b - B), (0, 0)))

    grid = (padded_b // tb,)
    out = pl.pallas_call(
        _sim_kernel,
        out_shape=jax.ShapeDtypeStruct((padded_b, V), jnp.float32),
        grid=grid,
        in_specs=[
            pl.BlockSpec((tb, V), lambda i: (i, 0)),   # streamed batch tile
            pl.BlockSpec((1, V), lambda i: (0, 0)),    # resident params
            pl.BlockSpec((1, V), lambda i: (0, 0)),
            pl.BlockSpec((1, V), lambda i: (0, 0)),
        ],
        out_specs=pl.BlockSpec((tb, V), lambda i: (i, 0)),
        compiler_params=pltpu.CompilerParams(
            dimension_semantics=("parallel",)),        # megacore sharding on v7x
    )(inp, pred_hat, false2, diff2)

    if padded_b != B:
        out = out[:B]
    return out


def sim_reference(inp, predicate, true_vec, false_vec):
    dot = jnp.sum(inp * predicate[None, :], axis=1)
    denom = jnp.maximum(jnp.linalg.norm(inp, axis=1), _COS_EPS) * jnp.maximum(
        jnp.linalg.norm(predicate), _COS_EPS)
    m = dot / denom
    m = jnp.where(m > 0, m, jnp.exp(m) - 1.0)
    return m[:, None] * true_vec[None, :] + (1.0 - m)[:, None] * false_vec[None, :]


if __name__ == "__main__":
    key = jax.random.PRNGKey(0)
    k_inp, k_pred, k_true, k_false = jax.random.split(key, 4)

    predicate = jax.random.normal(k_pred, (VEC_SIZE,), dtype=jnp.float32) * INIT_SCALE
    true_vec = jax.random.normal(k_true, (VEC_SIZE,), dtype=jnp.float32) * INIT_SCALE
    false_vec = jax.random.normal(k_false, (VEC_SIZE,), dtype=jnp.float32) * INIT_SCALE

    # Small, aligned batch (single grid step).
    B = 8
    inp = jax.random.normal(k_inp, (B, VEC_SIZE), dtype=jnp.float32)
    out = jax.block_until_ready(sim_forward(inp, predicate, true_vec, false_vec))
    ref = sim_reference(inp, predicate, true_vec, false_vec)
    assert out.shape == (B, VEC_SIZE)
    assert jnp.allclose(out, ref, atol=1e-5, rtol=1e-5)

    # Non-multiple-of-8 batch exercising the padding + batch-tiled grid path.
    B2 = 37
    inp2 = jax.random.normal(jax.random.PRNGKey(1), (B2, VEC_SIZE), dtype=jnp.float32)
    out2 = jax.block_until_ready(
        sim_forward(inp2, predicate, true_vec, false_vec, block_b=16))
    ref2 = sim_reference(inp2, predicate, true_vec, false_vec)
    assert out2.shape == (B2, VEC_SIZE)
    assert jnp.allclose(out2, ref2, atol=1e-5, rtol=1e-5)

    print("KERNEL_OK")
</pallas_src>

<mosaic_0001>
module attributes {stable_mosaic.version = 11 : i64} {
  func.func @_sim_kernel(%arg0: i32, %arg1: memref<8x512xf32, #tpu.memory_space<vmem>>, %arg2: memref<1x512xf32, #tpu.memory_space<vmem>>, %arg3: memref<1x512xf32, #tpu.memory_space<vmem>>, %arg4: memref<1x512xf32, #tpu.memory_space<vmem>>, %arg5: memref<8x512xf32, #tpu.memory_space<vmem>>) attributes {dimension_semantics = [#tpu.dimension_semantics<parallel>], iteration_bounds = array<i64: 1>, scalar_prefetch = 0 : i64, scratch_operands = 0 : i64, tpu.core_type = #tpu.core_type<tc>, window_params = [{transform_indices = @transform_0, window_bounds = array<i64: 8, 512>}, {pipeline_mode = #tpu.pipeline_mode<synchronous>, transform_indices = @transform_1, window_bounds = array<i64: 1, 512>}, {pipeline_mode = #tpu.pipeline_mode<synchronous>, transform_indices = @transform_2, window_bounds = array<i64: 1, 512>}, {pipeline_mode = #tpu.pipeline_mode<synchronous>, transform_indices = @transform_3, window_bounds = array<i64: 1, 512>}, {transform_indices = @transform_4, window_bounds = array<i64: 8, 512>}]} {
    %c0 = arith.constant 0 : index
    %c0_0 = arith.constant 0 : index
    %0 = vector.load %arg1[%c0, %c0_0] : memref<8x512xf32, #tpu.memory_space<vmem>>, vector<8x512xf32>
    %c0_1 = arith.constant 0 : index
    %c0_2 = arith.constant 0 : index
    %1 = vector.load %arg2[%c0_1, %c0_2] : memref<1x512xf32, #tpu.memory_space<vmem>>, vector<1x512xf32>
    %c0_3 = arith.constant 0 : index
    %c0_4 = arith.constant 0 : index
    %2 = vector.load %arg3[%c0_3, %c0_4] : memref<1x512xf32, #tpu.memory_space<vmem>>, vector<1x512xf32>
    %c0_5 = arith.constant 0 : index
    %c0_6 = arith.constant 0 : index
    %3 = vector.load %arg4[%c0_5, %c0_6] : memref<1x512xf32, #tpu.memory_space<vmem>>, vector<1x512xf32>
    %4 = vector.broadcast %1 : vector<1x512xf32> to vector<8x512xf32>
    %5 = arith.mulf %0, %4 : vector<8x512xf32>
    %cst = arith.constant dense<0.000000e+00> : vector<8xf32>
    %6 = vector.multi_reduction <add>, %5, %cst [1] : vector<8x512xf32> to vector<8xf32>
    %7 = vector.shape_cast %6 : vector<8xf32> to vector<8x1xf32>
    %8 = arith.mulf %0, %0 : vector<8x512xf32>
    %cst_7 = arith.constant dense<0.000000e+00> : vector<8xf32>
    %9 = vector.multi_reduction <add>, %8, %cst_7 [1] : vector<8x512xf32> to vector<8xf32>
    %10 = vector.shape_cast %9 : vector<8xf32> to vector<8x1xf32>
    %cst_8 = arith.constant 1.000000e-16 : f32
    %11 = vector.broadcast %cst_8 : f32 to vector<8x1xf32>
    %12 = arith.maximumf %10, %11 : vector<8x1xf32>
    %13 = math.rsqrt %12 : vector<8x1xf32>
    %14 = arith.mulf %7, %13 : vector<8x1xf32>
    %cst_9 = arith.constant 0.000000e+00 : f32
    %15 = vector.broadcast %cst_9 : f32 to vector<8x1xf32>
    %16 = arith.cmpf ogt, %14, %15 : vector<8x1xf32>
    %17 = math.exp %14 : vector<8x1xf32>
    %cst_10 = arith.constant 1.000000e+00 : f32
    %18 = vector.broadcast %cst_10 : f32 to vector<8x1xf32>
    %19 = arith.subf %17, %18 : vector<8x1xf32>
    %20 = arith.select %16, %14, %19 : vector<8x1xi1>, vector<8x1xf32>
    %21 = vector.broadcast %20 : vector<8x1xf32> to vector<8x512xf32>
    %22 = vector.broadcast %3 : vector<1x512xf32> to vector<8x512xf32>
    %23 = arith.mulf %21, %22 : vector<8x512xf32>
    %24 = vector.broadcast %2 : vector<1x512xf32> to vector<8x512xf32>
    %25 = arith.addf %24, %23 : vector<8x512xf32>
    %c0_11 = arith.constant 0 : index
    %c0_12 = arith.constant 0 : index
    %26 = vector.load %arg5[%c0_11, %c0_12] : memref<8x512xf32, #tpu.memory_space<vmem>>, vector<8x512xf32>
    tpu.vector_store %arg5[%c0_11, %c0_12], %25 {strides = array<i32>} : memref<8x512xf32, #tpu.memory_space<vmem>>, vector<8x512xf32>,
    return
  }
  func.func @transform_0(%arg0: i32) -> (i32, i32) {
    %c0_i32 = arith.constant 0 : i32
    %c0_i32_0 = arith.constant 0 : i32
    return %arg0, %c0_i32 : i32, i32
  }
  func.func @transform_1(%arg0: i32) -> (i32, i32) {
    %c0_i32 = arith.constant 0 : i32
    %c0_i32_0 = arith.constant 0 : i32
    %c0_i32_1 = arith.constant 0 : i32
    return %c0_i32, %c0_i32_0 : i32, i32
  }
  func.func @transform_2(%arg0: i32) -> (i32, i32) {
    %c0_i32 = arith.constant 0 : i32
    %c0_i32_0 = arith.constant 0 : i32
    %c0_i32_1 = arith.constant 0 : i32
    return %c0_i32, %c0_i32_0 : i32, i32
  }
  func.func @transform_3(%arg0: i32) -> (i32, i32) {
    %c0_i32 = arith.constant 0 : i32
    %c0_i32_0 = arith.constant 0 : i32
    %c0_i32_1 = arith.constant 0 : i32
    return %c0_i32, %c0_i32_0 : i32, i32
  }
  func.func @transform_4(%arg0: i32) -> (i32, i32) {
    %c0_i32 = arith.constant 0 : i32
    %c0_i32_0 = arith.constant 0 : i32
    return %arg0, %c0_i32 : i32, i32
  }
}

</mosaic_0001>

<llo_original>
// kernel: tpu_custom_call.1
$region0: #{tpu_custom_call.1}
  #allocation0 [shape = 'u32[]', space=smem, size = 0x4, offset = 0x4, fixed_abs, tag = 'smem constant byte address 0x4 - core index']
  #allocation1 [shape = 'u32[144,128]{1,0:T(1,128)}', space=vmem, size = 0x12000, scoped, tag = 'internal scratch']
  %s0 = inlined_call_operand.hbm [shape: f32[8,512], index: 0, kind: input, shape index: {}]
  %s1 = inlined_call_operand.hbm [shape: f32[1,512], index: 1, kind: input, shape index: {}]
  %s2 = inlined_call_operand.vmem [shape: f32[1,512], index: 2, kind: input, shape index: {}]
  %s3 = inlined_call_operand.vmem [shape: f32[1,512], index: 3, kind: input, shape index: {}]
  %s4 = inlined_call_operand.hbm [shape: f32[8,512], index: 4, kind: output, shape index: {}]
  %s5 = sld [smem:[#allocation0]]
  $region34: #{tpu_custom_call.1} parent=0
    _
  %s7 = ssub.s32 1, %s5
  %s8 = scalar_select 0, %s7, %s5
  $region1: #{tpu_custom_call.1} parent=0
    #allocation2 [shape = 'u8[16384]{0}', space=vmem, size = 0x4000, scoped, tag = 'input window, operand 0, single buffered']
    #allocation3 [shape = 's32[1]{0}', space=sflag, size = 0x4, scoped, tag = 'scoped memory for tpu_custom_call.1']
    #allocation4 [shape = 's32[1]{0}', space=sflag, size = 0x4, scoped, tag = 'scoped memory for tpu_custom_call.1']
    #allocation5 [shape = 'u8[2048]{0}', space=vmem, size = 0x800, scoped, tag = 'input window, operand 1, single buffered']
    #allocation6 [shape = 's32[1]{0}', space=sflag, size = 0x4, scoped, tag = 'scoped memory for tpu_custom_call.1']
    #allocation7 [shape = 'u8[16384]{0}', space=vmem, size = 0x4000, scoped, tag = 'output window, operand 0, single buffered']
    %9 = vsyncpa [#allocation3], 0
    %10 = vsyncpa [#allocation6], 0
    %11 = vsyncpa [#allocation4], 0
    // Predicated region
    $region2: #{tpu_custom_call.1} parent=1 // pred_check
      _
    $region3: #{tpu_custom_call.1} parent=1 // pred_check_branch
      %13 = sbr.rel (0) target = $region5
    $region4: #{tpu_custom_call.1} parent=1 // pred_region
      %s15 = ssub.s32 512, 512
      %16 = vsyncadd [#allocation3], %s15
      %s18 = sshll.u32 [#allocation2], 4
      %s19 = int_to_ptr.vmem [resolvable:$true] %s18
      %21 = dma.hbm_to_vmem [thread:$0]  %s0, 512, %s19, [#allocation3]
    $region5: #{tpu_custom_call.1} parent=1 // pred_fallthru
      _
    // Predicated region
    $region6: #{tpu_custom_call.1} parent=1 // pred_check
      _
    $region7: #{tpu_custom_call.1} parent=1 // pred_check_branch
      %23 = sbr.rel (0) target = $region9
    $region8: #{tpu_custom_call.1} parent=1 // pred_region
      %s25 = ssub.s32 64, 64
      %26 = vsyncadd [#allocation6], %s25
      %s28 = sshll.u32 [#allocation5], 4
      %s29 = int_to_ptr.vmem [resolvable:$true] %s28
      %31 = dma.hbm_to_vmem [thread:$0]  %s1, 64, %s29, [#allocation6]
    $region9: #{tpu_custom_call.1} parent=1 // pred_fallthru
      _
    // Predicated region
    $region10: #{tpu_custom_call.1} parent=1 // pred_check
      _
    $region11: #{tpu_custom_call.1} parent=1 // pred_check_branch
      %33 = sbr.rel (0) target = $region13
    $region12: #{tpu_custom_call.1} parent=1 // pred_region
      _
    $region13: #{tpu_custom_call.1} parent=1 // pred_fallthru
      _
    // Predicated region
    $region14: #{tpu_custom_call.1} parent=1 // pred_check
      _
    $region15: #{tpu_custom_call.1} parent=1 // pred_check_branch
      %35 = sbr.rel (0) target = $region17
    $region16: #{tpu_custom_call.1} parent=1 // pred_region
      _
    $region17: #{tpu_custom_call.1} parent=1 // pred_fallthru
      _
    // Predicated region
    $region18: #{tpu_custom_call.1} parent=1 // pred_check
      _
    $region19: #{tpu_custom_call.1} parent=1 // pred_check_branch
      %37 = sbr.rel (0) target = $region21
    $region20: #{tpu_custom_call.1} parent=1 // pred_region
      %38 = dma.done [#allocation3], 512
    $region21: #{tpu_custom_call.1} parent=1 // pred_fallthru
      _
    // Predicated region
    $region22: #{tpu_custom_call.1} parent=1 // pred_check
      _
    $region23: #{tpu_custom_call.1} parent=1 // pred_check_branch
      %40 = sbr.rel (0) target = $region25
    $region24: #{tpu_custom_call.1} parent=1 // pred_region
      %41 = dma.done [#allocation6], 64
    $region25: #{tpu_custom_call.1} parent=1 // pred_fallthru
      _
    %v42 = vld [vmem:[#allocation2] sm:$0xff]
    %v43 = vld [vmem:[#allocation2 + $0x8] sm:$0xff]
    %v44 = vld [vmem:[#allocation2 + $0x10] sm:$0xff]
    %v45 = vld [vmem:[#allocation2 + $0x18] sm:$0xff]
    %v46 = vld [vmem:[#allocation5] sm:$0xf]
    %v47 = vld [vmem:[%s2] sm:$0xf]
    %v48 = vld [vmem:[%s3] sm:$0xf]
    %v50 = vlaneseq
    %v51 = vshrl.u32 %v50, 7
    %v52 = vsub.s32 0, %v51
    %v53 = vrot.slane %v46, %v52
    %v54 = vlaneseq
    %v55 = vshrl.u32 %v54, 7
    %v56 = vsub.s32 1, %v55
    %v57 = vrot.slane %v46, %v56
    %v58 = vlaneseq
    %v59 = vshrl.u32 %v58, 7
    %v60 = vsub.s32 2, %v59
    %v61 = vrot.slane %v46, %v60
    %v62 = vlaneseq
    %v63 = vshrl.u32 %v62, 7
    %v64 = vsub.s32 3, %v63
    %v65 = vrot.slane %v46, %v64
    %v70 = vmul.f32 %v42, %v53
    %v71 = vmul.f32 %v43, %v57
    %v72 = vmul.f32 %v44, %v61
    %v73 = vmul.f32 %v45, %v65
    %v74 = vadd.f32 %v70, %v71
    %v75 = vadd.f32 %v74, %v72
    %v76 = vadd.f32 %v75, %v73
    %77 = vadd.xlane.f32.xlu0 %v76
    %v78 = vpop.xlane.xlu0 %77
    %v79 = vmul.f32 %v42, %v42
    %v80 = vmul.f32 %v43, %v43
    %v81 = vmul.f32 %v44, %v44
    %v82 = vmul.f32 %v45, %v45
    %v83 = vadd.f32 %v79, %v80
    %v84 = vadd.f32 %v83, %v81
    %v85 = vadd.f32 %v84, %v82
    %86 = vadd.xlane.f32.xlu0 %v85
    %v87 = vpop.xlane.xlu0 %86
    %v88 = vmax.f32 %v87, 1e-16
    %v89 = vrsqrt.pop %v88
    %v90 = vmul.f32 %v78, %v89
    %vm91 = vcmp.gt.f32.partialorder %v90, 0.0
    %v92 = vmul.f32 %v90, 1.442695
    %v93 = vpow.pop %v92
    %v94 = vsub.f32 %v93, 1.0
    %v95 = vsel %vm91, %v90, %v94
    %v97 = vlaneseq
    %v98 = vshrl.u32 %v97, 7
    %v99 = vsub.s32 0, %v98
    %v100 = vrot.slane %v48, %v99
    %v101 = vlaneseq
    %v102 = vshrl.u32 %v101, 7
    %v103 = vsub.s32 1, %v102
    %v104 = vrot.slane %v48, %v103
    %v105 = vlaneseq
    %v106 = vshrl.u32 %v105, 7
    %v107 = vsub.s32 2, %v106
    %v108 = vrot.slane %v48, %v107
    %v109 = vlaneseq
    %v110 = vshrl.u32 %v109, 7
    %v111 = vsub.s32 3, %v110
    %v112 = vrot.slane %v48, %v111
    %v117 = vmul.f32 %v95, %v100
    %v118 = vmul.f32 %v95, %v104
    %v119 = vmul.f32 %v95, %v108
    %v120 = vmul.f32 %v95, %v112
    %v122 = vlaneseq
    %v123 = vshrl.u32 %v122, 7
    %v124 = vsub.s32 0, %v123
    %v125 = vrot.slane %v47, %v124
    %v126 = vlaneseq
    %v127 = vshrl.u32 %v126, 7
    %v128 = vsub.s32 1, %v127
    %v129 = vrot.slane %v47, %v128
    %v130 = vlaneseq
    %v131 = vshrl.u32 %v130, 7
    %v132 = vsub.s32 2, %v131
    %v133 = vrot.slane %v47, %v132
    %v134 = vlaneseq
    %v135 = vshrl.u32 %v134, 7
    %v136 = vsub.s32 3, %v135
    %v137 = vrot.slane %v47, %v136
    %v142 = vadd.f32 %v125, %v117
    %v143 = vadd.f32 %v129, %v118
    %v144 = vadd.f32 %v133, %v119
    %v145 = vadd.f32 %v137, %v120
    %146 = vst [vmem:[#allocation7] sm:$0xff] %v142
    %147 = vst [vmem:[#allocation7 + $0x8] sm:$0xff] %v143
    %148 = vst [vmem:[#allocation7 + $0x10] sm:$0xff] %v144
    %149 = vst [vmem:[#allocation7 + $0x18] sm:$0xff] %v145
    // Predicated region
    $region26: #{tpu_custom_call.1} parent=1 // pred_check
      _
    $region27: #{tpu_custom_call.1} parent=1 // pred_check_branch
      %151 = sbr.rel (0) target = $region29
    $region28: #{tpu_custom_call.1} parent=1 // pred_region
      %s153 = ssub.s32 512, 512
      %154 = vsyncadd [#allocation4], %s153
      %s156 = sshll.u32 [#allocation7], 4
      %s157 = int_to_ptr.vmem [resolvable:$true] %s156
      %159 = dma.vmem_to_hbm [thread:$0]  %s157, 512, %s4, [#allocation4]
    $region29: #{tpu_custom_call.1} parent=1 // pred_fallthru
      _
    // Predicated region
    $region30: #{tpu_custom_call.1} parent=1 // pred_check
      _
    $region31: #{tpu_custom_call.1} parent=1 // pred_check_branch
      %161 = sbr.rel (0) target = $region33
    $region32: #{tpu_custom_call.1} parent=1 // pred_region
      %162 = dma.done [#allocation4], 512
    $region33: #{tpu_custom_call.1} parent=1 // pred_fallthru
      _
    %163 = vsyncpa [#allocation3], 1
    %164 = vsyncpa [#allocation6], 1
    %165 = vsyncpa [#allocation4], 1

</llo_original>
